<compile_context>
chip_gen: v6e
topology: v6e:2x2x1
jax: 0.10.0
libtpu: 0.0.40
codegen_flags: <defaults>
</compile_context>

<pallas_src>
import functools
import math

import jax
import jax.numpy as jnp
from jax.experimental import pallas as pl
from jax.experimental.pallas import tpu as pltpu

_DEG2RAD = 0.017453292519943295
_EARTH_RADIUS_M = 6371000.0
# With y = sqrt(a) and x = sqrt(1 - a + 1e-8) we have x*x + y*y == 1 + 1e-8
# identically, so hypot(y, x) is a compile-time constant (saves one EUP sqrt,
# two muls and an add per element).  NaN still propagates through y and x.
_HYPOT_CONST = math.sqrt(1.0 + 1e-8)

_SMALL_N_MAX = 256          # below this, skip all host-side packing (latency-bound)
_DEFAULT_BLOCK_ROWS = 512   # (4, 512, 128) f32 block = 1 MiB per buffer


def _scaled_atan2_nonneg(y, x, scale):
    """scale * atan2(y, x) for y >= 0, x > 0 (always true for the haversine args).

    Two half-angle reductions bring the angle into [0, pi/16]; a degree-9 odd
    Taylor polynomial finishes.  Absolute angle error < 2e-8 rad (sub-meter after
    scaling by Earth radius), i.e. effectively f32-resolution limited.  Uses only
    mul/add/div/sqrt so it lowers on every TPU generation; NaN inputs (a < 0 or
    a > 1 + 1e-8) propagate to NaN exactly like torch.atan2 fed a NaN.
    """
    t = y / (_HYPOT_CONST + x)                    # tan(theta/2)  in [0, 1)
    t = t / (1.0 + jnp.sqrt(1.0 + t * t))         # tan(theta/4)
    t = t / (1.0 + jnp.sqrt(1.0 + t * t))         # tan(theta/8)  in [0, tan(pi/16)]
    t2 = t * t
    atan_t = t * (1.0 + t2 * (-1.0 / 3.0
                              + t2 * (0.2
                                      + t2 * (-1.0 / 7.0
                                              + t2 * (1.0 / 9.0)))))
    return (8.0 * scale) * atan_t                 # 8 * scale folds at trace time


def _haversine_distance(p_lat_raw, p_lon_raw, t_lat_raw, t_lon_raw, *,
                        lat_std, lat_mean, lon_std, lon_mean):
    """Elementwise haversine distance (meters) + raw-NaN mask; pure VPU/EUP work."""
    # NaN mask on the RAW inputs: jnp.clip behaviour on NaN is implementation
    # defined, so this mask is load-bearing for torch parity (a NaN anywhere in a
    # (pred, target) pair drops that pair from the mean).  Do NOT remove.
    any_nan = ((p_lat_raw != p_lat_raw) | (p_lon_raw != p_lon_raw) |
               (t_lat_raw != t_lat_raw) | (t_lon_raw != t_lon_raw))

    pred_lat = jnp.clip(p_lat_raw, -5.0, 5.0) * lat_std + lat_mean
    pred_lon = jnp.clip(p_lon_raw, -5.0, 5.0) * lon_std + lon_mean
    true_lat = jnp.clip(t_lat_raw, -5.0, 5.0) * lat_std + lat_mean
    true_lon = jnp.clip(t_lon_raw, -5.0, 5.0) * lon_std + lon_mean

    phi1 = pred_lat * _DEG2RAD
    phi2 = true_lat * _DEG2RAD
    dphi = (true_lat - pred_lat) * _DEG2RAD
    dlam = (true_lon - pred_lon) * _DEG2RAD

    sdp = jnp.sin(0.5 * dphi)
    sdl = jnp.sin(0.5 * dlam)
    a = sdp * sdp + jnp.cos(phi1) * jnp.cos(phi2) * sdl * sdl

    # distance = R * 2 * atan2(sqrt(a), sqrt(1 - a + 1e-8)); the 2 * 8 * R constant
    # chain is folded into a single per-element multiply inside the atan2 helper.
    # sqrt of a negative -> NaN, excluded later by the finite mask (like torch).
    dist = _scaled_atan2_nonneg(jnp.sqrt(a), jnp.sqrt(1.0 - a + 1e-8),
                                2.0 * _EARTH_RADIUS_M)
    return dist, any_nan


def _haversine_small_kernel(p_ref, t_ref, out_ref, *,
                            lat_std, lat_mean, lon_std, lon_mean):
    """Gridless fast path: raw (n, 2) preds/targets straight from HBM, n small."""
    p = p_ref[...]                                # (n, 2)
    t = t_ref[...]
    dist, any_nan = _haversine_distance(
        p[:, 0:1], p[:, 1:2], t[:, 0:1], t[:, 1:2],
        lat_std=lat_std, lat_mean=lat_mean, lon_std=lon_std, lon_mean=lon_mean)
    finite = jnp.abs(dist) < jnp.inf              # == torch.isfinite (NaN/Inf -> False)
    valid = finite & jnp.logical_not(any_nan)
    total = jnp.sum(jnp.where(valid, dist, 0.0), axis=0, keepdims=True)    # (1, 1)
    count = jnp.sum(jnp.where(valid, 1.0, 0.0), axis=0, keepdims=True)     # (1, 1)
    out_ref[...] = total / count                  # 0/0 -> NaN, like torch.mean([])


def _haversine_tiled_kernel(slab_ref, out_ref, sum_ref, cnt_ref, *,
                            lat_std, lat_mean, lon_std, lon_mean):
    """Gridded path: slab block is (4, block_rows, 128) dense f32 planes."""
    step = pl.program_id(0)

    @pl.when(step == 0)
    def _():
        sum_ref[...] = jnp.zeros_like(sum_ref)
        cnt_ref[...] = jnp.zeros_like(cnt_ref)

    dist, any_nan = _haversine_distance(
        slab_ref[0], slab_ref[1], slab_ref[2], slab_ref[3],
        lat_std=lat_std, lat_mean=lat_mean, lon_std=lon_std, lon_mean=lon_mean)
    finite = jnp.abs(dist) < jnp.inf
    valid = finite & jnp.logical_not(any_nan)     # NaN padding lanes drop out here
    sum_ref[...] += jnp.sum(jnp.where(valid, dist, 0.0), axis=0, keepdims=True)
    cnt_ref[...] += jnp.sum(jnp.where(valid, 1.0, 0.0), axis=0, keepdims=True)

    @pl.when(step == pl.num_programs(0) - 1)
    def _():
        total = jnp.sum(sum_ref[...], axis=1, keepdims=True)   # single lane reduce
        count = jnp.sum(cnt_ref[...], axis=1, keepdims=True)
        out_ref[...] = total / count


def haversine_distance_loss(preds, targets, *, lat_std, lat_mean, lon_std, lon_mean,
                            ref_lat=56.0, ref_lon=10.0,
                            block_rows=_DEFAULT_BLOCK_ROWS):
    """Pallas TPU implementation of HaversineDistanceLoss.forward (eval semantics)."""
    del ref_lat, ref_lon  # stored by the torch module but unused in forward
    assert preds.shape == targets.shape and preds.shape[-1] == 2, (preds.shape, targets.shape)
    n = math.prod(preds.shape[:-1])
    consts = dict(lat_std=float(lat_std), lat_mean=float(lat_mean),
                  lon_std=float(lon_std), lon_mean=float(lon_mean))

    p = preds.reshape(n, 2).astype(jnp.float32)   # contiguous reshape, no relayout
    t = targets.reshape(n, 2).astype(jnp.float32)

    if n <= _SMALL_N_MAX:
        # Latency-bound regime (the shipped workload is n ~= 10): no host-side
        # transpose / concat / pad, one gridless pallas_call on the raw arrays.
        out = pl.pallas_call(
            functools.partial(_haversine_small_kernel, **consts),
            out_shape=jax.ShapeDtypeStruct((1, 1), jnp.float32),
            in_specs=[pl.BlockSpec(memory_space=pltpu.MemorySpace.VMEM),
                      pl.BlockSpec(memory_space=pltpu.MemorySpace.VMEM)],
            out_specs=pl.BlockSpec(memory_space=pltpu.MemorySpace.VMEM),
        )(p, t)
        return out[0, 0]

    # Scalable path: pack into sublane+lane dense (4, rows, 128) planes
    # (rows a multiple of block_rows) and grid over the row tiles.
    block_rows = max(8, (int(block_rows) // 8) * 8)
    rows = pl.cdiv(n, 128)
    if rows <= block_rows:
        rows = ((rows + 7) // 8) * 8
        block_rows = rows
    else:
        rows = ((rows + block_rows - 1) // block_rows) * block_rows
    n_pad = rows * 128

    # TODO(synk): this stack is a minor-dim-2 relayout pass in XLA; if a producer
    # can emit separate lat/lon planes (or large-N traces show this pass dominating)
    # move the de-interleave in-kernel instead.
    slab = jnp.stack([p[:, 0], p[:, 1], t[:, 0], t[:, 1]], axis=0)        # (4, n)
    # Pad with NaN: padded entries fail the raw-NaN mask and are dropped from the
    # mean, so the kernel needs no index masking.
    slab = jnp.pad(slab, ((0, 0), (0, n_pad - n)), constant_values=jnp.nan)
    slab = slab.reshape(4, rows, 128)

    out = pl.pallas_call(
        functools.partial(_haversine_tiled_kernel, **consts),
        out_shape=jax.ShapeDtypeStruct((1, 1), jnp.float32),
        grid_spec=pltpu.PrefetchScalarGridSpec(
            num_scalar_prefetch=0,
            grid=(rows // block_rows,),
            in_specs=[pl.BlockSpec((4, block_rows, 128), lambda i: (0, i, 0))],
            out_specs=pl.BlockSpec((1, 1), lambda i: (0, 0)),
            scratch_shapes=[pltpu.VMEM((1, 128), jnp.float32),
                            pltpu.VMEM((1, 128), jnp.float32)]),
        compiler_params=pltpu.CompilerParams(
            dimension_semantics=("arbitrary",)),  # reduction axis
    )(slab)
    # TODO(synk): on v7x the reduction axis could additionally be split across the
    # two TensorCores (leading "parallel" axis + per-core partials); single-core here.
    return out[0, 0]


def haversine_loss_reference(preds, targets, *, lat_std, lat_mean, lon_std, lon_mean):
    """Plain-JAX transcription of the torch forward, for correctness checking."""
    p = jnp.clip(preds.astype(jnp.float32), -5.0, 5.0)
    t = jnp.clip(targets.astype(jnp.float32), -5.0, 5.0)
    pred_lat = p[..., 0] * lat_std + lat_mean
    pred_lon = p[..., 1] * lon_std + lon_mean
    true_lat = t[..., 0] * lat_std + lat_mean
    true_lon = t[..., 1] * lon_std + lon_mean
    phi1 = pred_lat * _DEG2RAD
    phi2 = true_lat * _DEG2RAD
    dphi = (true_lat - pred_lat) * _DEG2RAD
    dlam = (true_lon - pred_lon) * _DEG2RAD
    a = jnp.sin(dphi / 2) ** 2 + jnp.cos(phi1) * jnp.cos(phi2) * jnp.sin(dlam / 2) ** 2
    c = 2.0 * jnp.arctan2(jnp.sqrt(a), jnp.sqrt(1.0 - a + 1e-8))
    dist = _EARTH_RADIUS_M * c
    finite = jnp.isfinite(dist)
    return jnp.sum(jnp.where(finite, dist, 0.0)) / jnp.sum(jnp.where(finite, 1.0, 0.0))


if __name__ == "__main__":
    key = jax.random.PRNGKey(0)
    kp, kt, kp2, kt2 = jax.random.split(key, 4)

    lat_std, lat_mean = 0.05, 56.0
    lon_std, lon_mean = 0.08, 10.0

    # 1) Shipped workload size: predictions (batch=2, steps=5, 2) -> small fast path.
    B, T = 2, 5
    preds = 2.0 * jax.random.normal(kp, (B, T, 2), jnp.float32)
    targets = 2.0 * jax.random.normal(kt, (B, T, 2), jnp.float32)
    preds = preds.at[1, 3, 0].set(jnp.nan)   # this pair must be dropped from the mean

    loss_small = jax.block_until_ready(haversine_distance_loss(
        preds, targets, lat_std=lat_std, lat_mean=lat_mean,
        lon_std=lon_std, lon_mean=lon_mean))
    ref_small = haversine_loss_reference(
        preds, targets, lat_std=lat_std, lat_mean=lat_mean,
        lon_std=lon_std, lon_mean=lon_mean)
    assert loss_small.shape == (), loss_small.shape
    assert bool(jnp.isfinite(loss_small)), float(loss_small)
    rel = abs(float(loss_small) - float(ref_small)) / max(1.0, abs(float(ref_small)))
    assert rel < 1e-3, (float(loss_small), float(ref_small), rel)

    # 2) A still-small shape that exercises the tiled accumulator path:
    #    n = 16*125 = 2000 pairs, block_rows=8 -> 2 grid steps + NaN tail padding.
    B2, T2 = 16, 125
    preds2 = 2.0 * jax.random.normal(kp2, (B2, T2, 2), jnp.float32)
    targets2 = 2.0 * jax.random.normal(kt2, (B2, T2, 2), jnp.float32)
    preds2 = preds2.at[3, 17, 1].set(jnp.nan)

    loss_big = jax.block_until_ready(haversine_distance_loss(
        preds2, targets2, lat_std=lat_std, lat_mean=lat_mean,
        lon_std=lon_std, lon_mean=lon_mean, block_rows=8))
    ref_big = haversine_loss_reference(
        preds2, targets2, lat_std=lat_std, lat_mean=lat_mean,
        lon_std=lon_std, lon_mean=lon_mean)
    assert bool(jnp.isfinite(loss_big)), float(loss_big)
    rel2 = abs(float(loss_big) - float(ref_big)) / max(1.0, abs(float(ref_big)))
    assert rel2 < 1e-3, (float(loss_big), float(ref_big), rel2)

    print("KERNEL_OK")
</pallas_src>

<mosaic_0001>
module attributes {stable_mosaic.version = 11 : i64} {
  func.func @_haversine_small_kernel(%arg0: memref<10x2xf32, #tpu.memory_space<vmem>>, %arg1: memref<10x2xf32, #tpu.memory_space<vmem>>, %arg2: memref<1x1xf32, #tpu.memory_space<vmem>>) attributes {dimension_semantics = [], scalar_prefetch = 0 : i64, scratch_operands = 0 : i64, tpu.core_type = #tpu.core_type<tc>} {
    %c0 = arith.constant 0 : index
    %c0_0 = arith.constant 0 : index
    %0 = vector.load %arg0[%c0, %c0_0] : memref<10x2xf32, #tpu.memory_space<vmem>>, vector<10x2xf32>
    %c0_1 = arith.constant 0 : index
    %c0_2 = arith.constant 0 : index
    %1 = vector.load %arg1[%c0_1, %c0_2] : memref<10x2xf32, #tpu.memory_space<vmem>>, vector<10x2xf32>
    %2 = vector.extract_strided_slice %0 {offsets = [0, 0], sizes = [10, 1], strides = [1, 1]} : vector<10x2xf32> to vector<10x1xf32>
    %3 = vector.extract_strided_slice %0 {offsets = [0, 1], sizes = [10, 1], strides = [1, 1]} : vector<10x2xf32> to vector<10x1xf32>
    %4 = vector.extract_strided_slice %1 {offsets = [0, 0], sizes = [10, 1], strides = [1, 1]} : vector<10x2xf32> to vector<10x1xf32>
    %5 = vector.extract_strided_slice %1 {offsets = [0, 1], sizes = [10, 1], strides = [1, 1]} : vector<10x2xf32> to vector<10x1xf32>
    %6 = arith.cmpf one, %2, %2 : vector<10x1xf32>
    %7 = arith.cmpf one, %3, %3 : vector<10x1xf32>
    %8 = arith.ori %6, %7 : vector<10x1xi1>
    %9 = arith.cmpf one, %4, %4 : vector<10x1xf32>
    %10 = arith.ori %8, %9 : vector<10x1xi1>
    %11 = arith.cmpf one, %5, %5 : vector<10x1xf32>
    %12 = arith.ori %10, %11 : vector<10x1xi1>
    %cst = arith.constant -5.000000e+00 : f32
    %cst_3 = arith.constant 5.000000e+00 : f32
    %13 = vector.broadcast %cst : f32 to vector<10x1xf32>
    %14 = arith.maximumf %13, %2 : vector<10x1xf32>
    %15 = vector.broadcast %cst_3 : f32 to vector<10x1xf32>
    %16 = arith.minimumf %15, %14 : vector<10x1xf32>
    %cst_4 = arith.constant 5.000000e-02 : f32
    %17 = vector.broadcast %cst_4 : f32 to vector<10x1xf32>
    %18 = arith.mulf %16, %17 : vector<10x1xf32>
    %cst_5 = arith.constant 5.600000e+01 : f32
    %19 = vector.broadcast %cst_5 : f32 to vector<10x1xf32>
    %20 = arith.addf %18, %19 : vector<10x1xf32>
    %cst_6 = arith.constant -5.000000e+00 : f32
    %cst_7 = arith.constant 5.000000e+00 : f32
    %21 = vector.broadcast %cst_6 : f32 to vector<10x1xf32>
    %22 = arith.maximumf %21, %3 : vector<10x1xf32>
    %23 = vector.broadcast %cst_7 : f32 to vector<10x1xf32>
    %24 = arith.minimumf %23, %22 : vector<10x1xf32>
    %cst_8 = arith.constant 8.000000e-02 : f32
    %25 = vector.broadcast %cst_8 : f32 to vector<10x1xf32>
    %26 = arith.mulf %24, %25 : vector<10x1xf32>
    %cst_9 = arith.constant 1.000000e+01 : f32
    %27 = vector.broadcast %cst_9 : f32 to vector<10x1xf32>
    %28 = arith.addf %26, %27 : vector<10x1xf32>
    %cst_10 = arith.constant -5.000000e+00 : f32
    %cst_11 = arith.constant 5.000000e+00 : f32
    %29 = vector.broadcast %cst_10 : f32 to vector<10x1xf32>
    %30 = arith.maximumf %29, %4 : vector<10x1xf32>
    %31 = vector.broadcast %cst_11 : f32 to vector<10x1xf32>
    %32 = arith.minimumf %31, %30 : vector<10x1xf32>
    %cst_12 = arith.constant 5.000000e-02 : f32
    %33 = vector.broadcast %cst_12 : f32 to vector<10x1xf32>
    %34 = arith.mulf %32, %33 : vector<10x1xf32>
    %cst_13 = arith.constant 5.600000e+01 : f32
    %35 = vector.broadcast %cst_13 : f32 to vector<10x1xf32>
    %36 = arith.addf %34, %35 : vector<10x1xf32>
    %cst_14 = arith.constant -5.000000e+00 : f32
    %cst_15 = arith.constant 5.000000e+00 : f32
    %37 = vector.broadcast %cst_14 : f32 to vector<10x1xf32>
    %38 = arith.maximumf %37, %5 : vector<10x1xf32>
    %39 = vector.broadcast %cst_15 : f32 to vector<10x1xf32>
    %40 = arith.minimumf %39, %38 : vector<10x1xf32>
    %cst_16 = arith.constant 8.000000e-02 : f32
    %41 = vector.broadcast %cst_16 : f32 to vector<10x1xf32>
    %42 = arith.mulf %40, %41 : vector<10x1xf32>
    %cst_17 = arith.constant 1.000000e+01 : f32
    %43 = vector.broadcast %cst_17 : f32 to vector<10x1xf32>
    %44 = arith.addf %42, %43 : vector<10x1xf32>
    %cst_18 = arith.constant 0.0174532924 : f32
    %45 = vector.broadcast %cst_18 : f32 to vector<10x1xf32>
    %46 = arith.mulf %20, %45 : vector<10x1xf32>
    %cst_19 = arith.constant 0.0174532924 : f32
    %47 = vector.broadcast %cst_19 : f32 to vector<10x1xf32>
    %48 = arith.mulf %36, %47 : vector<10x1xf32>
    %49 = arith.subf %36, %20 : vector<10x1xf32>
    %cst_20 = arith.constant 0.0174532924 : f32
    %50 = vector.broadcast %cst_20 : f32 to vector<10x1xf32>
    %51 = arith.mulf %49, %50 : vector<10x1xf32>
    %52 = arith.subf %44, %28 : vector<10x1xf32>
    %cst_21 = arith.constant 0.0174532924 : f32
    %53 = vector.broadcast %cst_21 : f32 to vector<10x1xf32>
    %54 = arith.mulf %52, %53 : vector<10x1xf32>
    %cst_22 = arith.constant 5.000000e-01 : f32
    %55 = vector.broadcast %cst_22 : f32 to vector<10x1xf32>
    %56 = arith.mulf %55, %51 : vector<10x1xf32>
    %57 = math.sin %56 : vector<10x1xf32>
    %cst_23 = arith.constant 5.000000e-01 : f32
    %58 = vector.broadcast %cst_23 : f32 to vector<10x1xf32>
    %59 = arith.mulf %58, %54 : vector<10x1xf32>
    %60 = math.sin %59 : vector<10x1xf32>
    %61 = arith.mulf %57, %57 : vector<10x1xf32>
    %62 = math.cos %46 : vector<10x1xf32>
    %63 = math.cos %48 : vector<10x1xf32>
    %64 = arith.mulf %62, %63 : vector<10x1xf32>
    %65 = arith.mulf %64, %60 : vector<10x1xf32>
    %66 = arith.mulf %65, %60 : vector<10x1xf32>
    %67 = arith.addf %61, %66 : vector<10x1xf32>
    %68 = math.sqrt %67 : vector<10x1xf32>
    %cst_24 = arith.constant 1.000000e+00 : f32
    %69 = vector.broadcast %cst_24 : f32 to vector<10x1xf32>
    %70 = arith.subf %69, %67 : vector<10x1xf32>
    %cst_25 = arith.constant 9.99999993E-9 : f32
    %71 = vector.broadcast %cst_25 : f32 to vector<10x1xf32>
    %72 = arith.addf %70, %71 : vector<10x1xf32>
    %73 = math.sqrt %72 : vector<10x1xf32>
    %cst_26 = arith.constant 1.000000e+00 : f32
    %74 = vector.broadcast %cst_26 : f32 to vector<10x1xf32>
    %75 = arith.addf %74, %73 : vector<10x1xf32>
    %76 = arith.divf %68, %75 : vector<10x1xf32>
    %77 = arith.mulf %76, %76 : vector<10x1xf32>
    %cst_27 = arith.constant 1.000000e+00 : f32
    %78 = vector.broadcast %cst_27 : f32 to vector<10x1xf32>
    %79 = arith.addf %78, %77 : vector<10x1xf32>
    %80 = math.sqrt %79 : vector<10x1xf32>
    %cst_28 = arith.constant 1.000000e+00 : f32
    %81 = vector.broadcast %cst_28 : f32 to vector<10x1xf32>
    %82 = arith.addf %81, %80 : vector<10x1xf32>
    %83 = arith.divf %76, %82 : vector<10x1xf32>
    %84 = arith.mulf %83, %83 : vector<10x1xf32>
    %cst_29 = arith.constant 1.000000e+00 : f32
    %85 = vector.broadcast %cst_29 : f32 to vector<10x1xf32>
    %86 = arith.addf %85, %84 : vector<10x1xf32>
    %87 = math.sqrt %86 : vector<10x1xf32>
    %cst_30 = arith.constant 1.000000e+00 : f32
    %88 = vector.broadcast %cst_30 : f32 to vector<10x1xf32>
    %89 = arith.addf %88, %87 : vector<10x1xf32>
    %90 = arith.divf %83, %89 : vector<10x1xf32>
    %91 = arith.mulf %90, %90 : vector<10x1xf32>
    %cst_31 = arith.constant 0.111111112 : f32
    %92 = vector.broadcast %cst_31 : f32 to vector<10x1xf32>
    %93 = arith.mulf %91, %92 : vector<10x1xf32>
    %cst_32 = arith.constant -0.142857149 : f32
    %94 = vector.broadcast %cst_32 : f32 to vector<10x1xf32>
    %95 = arith.addf %94, %93 : vector<10x1xf32>
    %96 = arith.mulf %91, %95 : vector<10x1xf32>
    %cst_33 = arith.constant 2.000000e-01 : f32
    %97 = vector.broadcast %cst_33 : f32 to vector<10x1xf32>
    %98 = arith.addf %97, %96 : vector<10x1xf32>
    %99 = arith.mulf %91, %98 : vector<10x1xf32>
    %cst_34 = arith.constant -0.333333343 : f32
    %100 = vector.broadcast %cst_34 : f32 to vector<10x1xf32>
    %101 = arith.addf %100, %99 : vector<10x1xf32>
    %102 = arith.mulf %91, %101 : vector<10x1xf32>
    %cst_35 = arith.constant 1.000000e+00 : f32
    %103 = vector.broadcast %cst_35 : f32 to vector<10x1xf32>
    %104 = arith.addf %103, %102 : vector<10x1xf32>
    %105 = arith.mulf %90, %104 : vector<10x1xf32>
    %cst_36 = arith.constant 1.019360e+08 : f32
    %106 = vector.broadcast %cst_36 : f32 to vector<10x1xf32>
    %107 = arith.mulf %106, %105 : vector<10x1xf32>
    %108 = math.absf %107 : vector<10x1xf32>
    %cst_37 = arith.constant 0x7F800000 : f32
    %109 = vector.broadcast %cst_37 : f32 to vector<10x1xf32>
    %110 = arith.cmpf olt, %108, %109 : vector<10x1xf32>
    %cst_38 = arith.constant dense<true> : vector<10x1xi1>
    %111 = arith.xori %12, %cst_38 : vector<10x1xi1>
    %112 = arith.andi %110, %111 : vector<10x1xi1>
    %cst_39 = arith.constant 0.000000e+00 : f32
    %113 = vector.broadcast %cst_39 : f32 to vector<10x1xf32>
    %114 = arith.select %112, %107, %113 : vector<10x1xi1>, vector<10x1xf32>
    %cst_40 = arith.constant dense<0.000000e+00> : vector<1xf32>
    %115 = vector.multi_reduction <add>, %114, %cst_40 [0] : vector<10x1xf32> to vector<1xf32>
    %116 = vector.shape_cast %115 : vector<1xf32> to vector<1x1xf32>
    %cst_41 = arith.constant 1.000000e+00 : f32
    %cst_42 = arith.constant 0.000000e+00 : f32
    %117 = vector.broadcast %cst_41 : f32 to vector<10x1xf32>
    %118 = vector.broadcast %cst_42 : f32 to vector<10x1xf32>
    %119 = arith.select %112, %117, %118 : vector<10x1xi1>, vector<10x1xf32>
    %cst_43 = arith.constant dense<0.000000e+00> : vector<1xf32>
    %120 = vector.multi_reduction <add>, %119, %cst_43 [0] : vector<10x1xf32> to vector<1xf32>
    %121 = vector.shape_cast %120 : vector<1xf32> to vector<1x1xf32>
    %122 = arith.divf %116, %121 : vector<1x1xf32>
    %c0_44 = arith.constant 0 : index
    %c0_45 = arith.constant 0 : index
    %123 = vector.load %arg2[%c0_44, %c0_45] : memref<1x1xf32, #tpu.memory_space<vmem>>, vector<1x1xf32>
    tpu.vector_store %arg2[%c0_44, %c0_45], %122 {strides = array<i32>} : memref<1x1xf32, #tpu.memory_space<vmem>>, vector<1x1xf32>,
    return
  }
}

</mosaic_0001>

<llo_original>
// kernel: tpu_custom_call.1
$region0: #{tpu_custom_call.1}
  #allocation0 [shape = 'u32[]', space=smem, size = 0x4, offset = 0x4, fixed_abs, tag = 'smem constant byte address 0x4 - core index']
  #allocation1 [shape = 'u32[144,128]{1,0:T(1,128)}', space=vmem, size = 0x12000, scoped, tag = 'internal scratch']
  %s0 = inlined_call_operand.vmem [shape: f32[10,2], index: 0, kind: input, shape index: {}]
  %s1 = inlined_call_operand.vmem [shape: f32[10,2], index: 1, kind: input, shape index: {}]
  %s2 = inlined_call_operand.hbm [shape: f32[1,1], index: 2, kind: output, shape index: {}]
  %s3 = sld [smem:[#allocation0]]
  $region18: #{tpu_custom_call.1} parent=0
    _
  %s5 = ssub.s32 1, %s3
  %s6 = scalar_select 0, %s5, %s3
  $region1: #{tpu_custom_call.1} parent=0
    #allocation2 [shape = 'u8[512]{0}', space=vmem, size = 0x400, scoped, tag = 'output window, operand 0, single buffered']
    #allocation3 [shape = 's32[1]{0}', space=sflag, size = 0x4, scoped, tag = 'scoped memory for tpu_custom_call.1']
    %7 = vsyncpa [#allocation3], 0
    // Predicated region
    $region2: #{tpu_custom_call.1} parent=1 // pred_check
      _
    $region3: #{tpu_custom_call.1} parent=1 // pred_check_branch
      %9 = sbr.rel (0) target = $region5
    $region4: #{tpu_custom_call.1} parent=1 // pred_region
      _
    $region5: #{tpu_custom_call.1} parent=1 // pred_fallthru
      _
    // Predicated region
    $region6: #{tpu_custom_call.1} parent=1 // pred_check
      _
    $region7: #{tpu_custom_call.1} parent=1 // pred_check_branch
      %11 = sbr.rel (0) target = $region9
    $region8: #{tpu_custom_call.1} parent=1 // pred_region
      _
    $region9: #{tpu_custom_call.1} parent=1 // pred_fallthru
      _
    %v12 = vld [vmem:[%s0] sm:$0xff]
    %v13 = vld [vmem:[%s0 + $0x8] sm:$0x3]
    %v14 = vld [vmem:[%s1] sm:$0xff]
    %v15 = vld [vmem:[%s1 + $0x8] sm:$0x3]
    %vm16 = vcmp.ne.f32.partialorder %v12, %v12
    %vm17 = vcmp.ne.f32.partialorder %v13, %v13
    %v18 = vsel %vm16, 1, 0
    %v19 = vsel %vm17, 1, 0
    %20 = vrot.lane.b32.xlu0 %v18, 127
    %v21 = vpop.permute.xlu0 %20
    %22 = vrot.lane.b32.xlu0 %v19, 127
    %v23 = vpop.permute.xlu0 %22
    %vm24 = vcmp.ne.s32.totalorder %v21, 0
    %vm25 = vcmp.ne.s32.totalorder %v23, 0
    %vm26 = vmor %vm16, %vm24
    %vm27 = vmor %vm17, %vm25
    %vm28 = vcmp.ne.f32.partialorder %v14, %v14
    %vm29 = vcmp.ne.f32.partialorder %v15, %v15
    %vm30 = vmor %vm26, %vm28
    %vm31 = vmor %vm27, %vm29
    %v32 = vsel %vm28, 1, 0
    %v33 = vsel %vm29, 1, 0
    %34 = vrot.lane.b32.xlu0 %v32, 127
    %v35 = vpop.permute.xlu0 %34
    %36 = vrot.lane.b32.xlu0 %v33, 127
    %v37 = vpop.permute.xlu0 %36
    %vm38 = vcmp.ne.s32.totalorder %v35, 0
    %vm39 = vcmp.ne.s32.totalorder %v37, 0
    %vm40 = vmor %vm30, %vm38
    %vm41 = vmor %vm31, %vm39
    %v42 = vmax.f32 %v12, -5.0
    %v43 = vmax.f32 %v13, -5.0
    %v44 = vmin.f32 %v42, 5.0
    %v45 = vmin.f32 %v43, 5.0
    %v46 = vmul.f32 %v44, 0.05
    %v47 = vmul.f32 %v45, 0.05
    %v48 = vadd.f32 %v46, 56.0
    %v49 = vadd.f32 %v47, 56.0
    %v50 = vmul.f32 %v44, 0.08
    %v51 = vmul.f32 %v45, 0.08
    %v52 = vadd.f32 %v50, 10.0
    %v53 = vadd.f32 %v51, 10.0
    %v54 = vmax.f32 %v14, -5.0
    %v55 = vmax.f32 %v15, -5.0
    %v56 = vmin.f32 %v54, 5.0
    %v57 = vmin.f32 %v55, 5.0
    %v58 = vmul.f32 %v56, 0.05
    %v59 = vmul.f32 %v57, 0.05
    %v60 = vadd.f32 %v58, 56.0
    %v61 = vadd.f32 %v59, 56.0
    %v62 = vmul.f32 %v56, 0.08
    %v63 = vmul.f32 %v57, 0.08
    %v64 = vadd.f32 %v62, 10.0
    %v65 = vadd.f32 %v63, 10.0
    %v66 = vmul.f32 %v48, 0.017453292
    %v67 = vmul.f32 %v49, 0.017453292
    %v68 = vmul.f32 %v60, 0.017453292
    %v69 = vmul.f32 %v61, 0.017453292
    %v70 = vsub.f32 %v60, %v48
    %v71 = vsub.f32 %v61, %v49
    %v72 = vmul.f32 %v70, 0.017453292
    %v73 = vmul.f32 %v71, 0.017453292
    %v74 = vsub.f32 %v64, %v52
    %v75 = vsub.f32 %v65, %v53
    %v76 = vmul.f32 %v74, 0.017453292
    %v77 = vmul.f32 %v75, 0.017453292
    %v78 = vmul.f32 %v72, 0.5
    %v79 = vmul.f32 %v73, 0.5
    %v80 = vand.u32 2147483647, %v78
    %vm81 = vcmp.le.f32.partialorder %v80, 0.7853982
    %vm82 = vcmp.lt.s32.totalorder %v78, 0
    %v83 = vand.u32 %v78, 2139095040
    %v84 = vshrl.u32 %v83, 23
    %v85 = vsub.s32 %v84, 127
    %v86 = vand.u32 2147483647, %v78
    %v87 = vand.u32 %v86, 8388607
    %v88 = vor.u32 %v87, 8388608
    %v89 = vsub.s32 0, %v88
    %v90 = vadd.s32 %v85, 1
    %vm91 = vcmp.gt.s32.totalorder %v90, 0
    %v92 = vsel %vm91, %v90, 0
    %v93 = vshrl.u32 %v92, 5
    %v94 = vand.u32 %v92, 31
    %v95 = vsub.s32 32, %v94
    %v96 = vshrl.u32 683565275, %v95
    %v97 = vshll.u32 683565275, %v94
    %v98 = vshrl.u32 2475754826, %v95
    %v99 = vor.u32 %v97, %v98
    %v100 = vshll.u32 2475754826, %v94
    %v101 = vshrl.u32 2131351028, %v95
    %v102 = vor.u32 %v100, %v101
    %v103 = vshll.u32 2131351028, %v94
    %v104 = vshrl.u32 2102212464, %v95
    %v105 = vor.u32 %v103, %v104
    %v106 = vshll.u32 2102212464, %v94
    %v107 = vshrl.u32 920167782, %v95
    %v108 = vor.u32 %v106, %v107
    %v109 = vshll.u32 920167782, %v94
    %v110 = vshrl.u32 1326507024, %v95
    %v111 = vor.u32 %v109, %v110
    %vm112 = vcmp.lt.s32.totalorder %v93, 1
    %vm113 = vcmp.lt.s32.totalorder %v93, 2
    %vm114 = vcmp.lt.s32.totalorder %v93, 3
    %vm115 = vcmp.lt.s32.totalorder %v93, 4
    %v116 = vsel %vm112, %v96, %v99
    %v117 = vsel %vm115, %v105, 2102212464
    %v118 = vsel %vm114, %v102, %v117
    %v119 = vsel %vm113, %v116, %v118
    %v120 = vsel %vm112, %v99, %v102
    %v121 = vsel %vm115, %v108, 920167782
    %v122 = vsel %vm114, %v105, %v121
    %v123 = vsel %vm113, %v120, %v122
    %v124 = vsel %vm112, %v102, %v105
    %v125 = vsel %vm115, %v111, 1326507024
    %v126 = vsel %vm114, %v108, %v125
    %v127 = vsel %vm113, %v124, %v126
    %v128 = vshll.u32 %v88, 8
    %v129 = vmul.u32.u64.compose %v128, %v127
    %v130 = vextract.low.u32 %v129
    %v131 = vextract.high.u32 %v129
    %v132 = vmul.u32.u64.compose %v128, %v123
    %v133 = vextract.low.u32 %v132
    %v134 = vextract.high.u32 %v132
    %v135 = vmul.u32 %v128, %v119
    %v136 = vadd.s32 %v131, %v133
    %vm137 = vc.u32 %v131, %v133
    %v138 = vadd.s32 %v134, 1
    %v139 = vsel %vm137, %v138, %v134
    %v140 = vadd.s32 %v135, %v139
    %v141 = vadd.s32 %v140, 536870912
    %v142 = vshrl.u32 %v141, 30
    %v143 = vshll.u32 %v142, 30
    %v144 = vsub.s32 %v140, %v143
    %vm145 = vcmp.lt.s32.totalorder %v144, 0
    %v146 = vsub.s32 0, %v144
    %v147 = vsel %vm145, %v146, %v144
    %v148 = vclz %v147
    %v149 = vsub.s32 %v148, 2
    %vm150 = vcmp.gt.s32.totalorder 0, %v149
    %v151 = vsel %vm150, 0, %v149
    %v152 = vsub.s32 32, %v151
    %v153 = vshll.u32 %v144, %v151
    %v154 = vshrl.u32 %v136, %v152
    %v155 = vor.u32 %v153, %v154
    %v156 = vsub.s32 4294967266, %v151
    %v157 = vadd.s32 %v156, 127
    %v158 = vshll.u32 %v157, 23
    %v159 = vor.u32 4788187, %v158
    %v160 = vand.u32 2147483647, %v159
    %v162 = vcvt.s32.f32 %v155
    %v163 = vmul.f32 %v162, %v160
    %v164 = vxor.u32 %v163, 2147483648
    %v165 = vsel %vm82, %v164, %v163
    %v166 = vsub.s32 4, %v142
    %v167 = vsel %vm82, %v166, %v142
    %v168 = vsel %vm81, %v78, %v165
    %v169 = vsel %vm81, 0, %v167
    %v170 = vcosq.f32.pop %v168
    %v171 = vsinq.f32.pop %v168
    %vm172 = vweird.f32 %v78
    %v173 = vadd.s32 %v169, 3
    %v174 = vand.u32 %v173, 3
    %vm175 = vcmp.lt.s32.totalorder %v174, 2
    %vm176 = vcmp.eq.s32.totalorder %v174, 0
    %v177 = vxor.u32 %v171, 2147483648
    %v178 = vsel %vm176, %v170, %v177
    %vm179 = vcmp.eq.s32.totalorder %v174, 2
    %v180 = vxor.u32 %v170, 2147483648
    %v181 = vsel %vm179, %v180, %v171
    %v182 = vsel %vm175, %v178, %v181
    %v183 = vsel %vm172, nan, %v182
    %v184 = vand.u32 2147483647, %v79
    %vm185 = vcmp.le.f32.partialorder %v184, 0.7853982
    %vm186 = vcmp.lt.s32.totalorder %v79, 0
    %v187 = vand.u32 %v79, 2139095040
    %v188 = vshrl.u32 %v187, 23
    %v189 = vsub.s32 %v188, 127
    %v190 = vand.u32 2147483647, %v79
    %v191 = vand.u32 %v190, 8388607
    %v192 = vor.u32 %v191, 8388608
    %v193 = vsub.s32 0, %v192
    %v194 = vadd.s32 %v189, 1
    %vm195 = vcmp.gt.s32.totalorder %v194, 0
    %v196 = vsel %vm195, %v194, 0
    %v197 = vshrl.u32 %v196, 5
    %v198 = vand.u32 %v196, 31
    %v199 = vsub.s32 32, %v198
    %v200 = vshrl.u32 683565275, %v199
    %v201 = vshll.u32 683565275, %v198
    %v202 = vshrl.u32 2475754826, %v199
    %v203 = vor.u32 %v201, %v202
    %v204 = vshll.u32 2475754826, %v198
    %v205 = vshrl.u32 2131351028, %v199
    %v206 = vor.u32 %v204, %v205
    %v207 = vshll.u32 2131351028, %v198
    %v208 = vshrl.u32 2102212464, %v199
    %v209 = vor.u32 %v207, %v208
    %v210 = vshll.u32 2102212464, %v198
    %v211 = vshrl.u32 920167782, %v199
    %v212 = vor.u32 %v210, %v211
    %v213 = vshll.u32 920167782, %v198
    %v214 = vshrl.u32 1326507024, %v199
    %v215 = vor.u32 %v213, %v214
    %vm216 = vcmp.lt.s32.totalorder %v197, 1
    %vm217 = vcmp.lt.s32.totalorder %v197, 2
    %vm218 = vcmp.lt.s32.totalorder %v197, 3
    %vm219 = vcmp.lt.s32.totalorder %v197, 4
    %v220 = vsel %vm216, %v200, %v203
    %v221 = vsel %vm219, %v209, 2102212464
    %v222 = vsel %vm218, %v206, %v221
    %v223 = vsel %vm217, %v220, %v222
    %v224 = vsel %vm216, %v203, %v206
    %v225 = vsel %vm219, %v212, 920167782
    %v226 = vsel %vm218, %v209, %v225
    %v227 = vsel %vm217, %v224, %v226
    %v228 = vsel %vm216, %v206, %v209
    %v229 = vsel %vm219, %v215, 1326507024
    %v230 = vsel %vm218, %v212, %v229
    %v231 = vsel %vm217, %v228, %v230
    %v232 = vshll.u32 %v192, 8
    %v233 = vmul.u32.u64.compose %v232, %v231
    %v234 = vextract.low.u32 %v233
    %v235 = vextract.high.u32 %v233
    %v236 = vmul.u32.u64.compose %v232, %v227
    %v237 = vextract.low.u32 %v236
    %v238 = vextract.high.u32 %v236
    %v239 = vmul.u32 %v232, %v223
    %v240 = vadd.s32 %v235, %v237
    %vm241 = vc.u32 %v235, %v237
    %v242 = vadd.s32 %v238, 1
    %v243 = vsel %vm241, %v242, %v238
    %v244 = vadd.s32 %v239, %v243
    %v245 = vadd.s32 %v244, 536870912
    %v246 = vshrl.u32 %v245, 30
    %v247 = vshll.u32 %v246, 30
    %v248 = vsub.s32 %v244, %v247
    %vm249 = vcmp.lt.s32.totalorder %v248, 0
    %v250 = vsub.s32 0, %v248
    %v251 = vsel %vm249, %v250, %v248
    %v252 = vclz %v251
    %v253 = vsub.s32 %v252, 2
    %vm254 = vcmp.gt.s32.totalorder 0, %v253
    %v255 = vsel %vm254, 0, %v253
    %v256 = vsub.s32 32, %v255
    %v257 = vshll.u32 %v248, %v255
    %v258 = vshrl.u32 %v240, %v256
    %v259 = vor.u32 %v257, %v258
    %v260 = vsub.s32 4294967266, %v255
    %v261 = vadd.s32 %v260, 127
    %v262 = vshll.u32 %v261, 23
    %v263 = vor.u32 4788187, %v262
    %v264 = vand.u32 2147483647, %v263
    %v266 = vcvt.s32.f32 %v259
    %v267 = vmul.f32 %v266, %v264
    %v268 = vxor.u32 %v267, 2147483648
    %v269 = vsel %vm186, %v268, %v267
    %v270 = vsub.s32 4, %v246
    %v271 = vsel %vm186, %v270, %v246
    %v272 = vsel %vm185, %v79, %v269
    %v273 = vsel %vm185, 0, %v271
    %v274 = vcosq.f32.pop %v272
    %v275 = vsinq.f32.pop %v272
    %vm276 = vweird.f32 %v79
    %v277 = vadd.s32 %v273, 3
    %v278 = vand.u32 %v277, 3
    %vm279 = vcmp.lt.s32.totalorder %v278, 2
    %vm280 = vcmp.eq.s32.totalorder %v278, 0
    %v281 = vxor.u32 %v275, 2147483648
    %v282 = vsel %vm280, %v274, %v281
    %vm283 = vcmp.eq.s32.totalorder %v278, 2
    %v284 = vxor.u32 %v274, 2147483648
    %v285 = vsel %vm283, %v284, %v275
    %v286 = vsel %vm279, %v282, %v285
    %v287 = vsel %vm276, nan, %v286
    %v288 = vmul.f32 %v76, 0.5
    %v289 = vmul.f32 %v77, 0.5
    %v290 = vand.u32 2147483647, %v288
    %vm291 = vcmp.le.f32.partialorder %v290, 0.7853982
    %vm292 = vcmp.lt.s32.totalorder %v288, 0
    %v293 = vand.u32 %v288, 2139095040
    %v294 = vshrl.u32 %v293, 23
    %v295 = vsub.s32 %v294, 127
    %v296 = vand.u32 2147483647, %v288
    %v297 = vand.u32 %v296, 8388607
    %v298 = vor.u32 %v297, 8388608
    %v299 = vsub.s32 0, %v298
    %v300 = vadd.s32 %v295, 1
    %vm301 = vcmp.gt.s32.totalorder %v300, 0
    %v302 = vsel %vm301, %v300, 0
    %v303 = vshrl.u32 %v302, 5
    %v304 = vand.u32 %v302, 31
    %v305 = vsub.s32 32, %v304
    %v306 = vshrl.u32 683565275, %v305
    %v307 = vshll.u32 683565275, %v304
    %v308 = vshrl.u32 2475754826, %v305
    %v309 = vor.u32 %v307, %v308
    %v310 = vshll.u32 2475754826, %v304
    %v311 = vshrl.u32 2131351028, %v305
    %v312 = vor.u32 %v310, %v311
    %v313 = vshll.u32 2131351028, %v304
    %v314 = vshrl.u32 2102212464, %v305
    %v315 = vor.u32 %v313, %v314
    %v316 = vshll.u32 2102212464, %v304
    %v317 = vshrl.u32 920167782, %v305
    %v318 = vor.u32 %v316, %v317
    %v319 = vshll.u32 920167782, %v304
    %v320 = vshrl.u32 1326507024, %v305
    %v321 = vor.u32 %v319, %v320
    %vm322 = vcmp.lt.s32.totalorder %v303, 1
    %vm323 = vcmp.lt.s32.totalorder %v303, 2
    %vm324 = vcmp.lt.s32.totalorder %v303, 3
    %vm325 = vcmp.lt.s32.totalorder %v303, 4
    %v326 = vsel %vm322, %v306, %v309
    %v327 = vsel %vm325, %v315, 2102212464
    %v328 = vsel %vm324, %v312, %v327
    %v329 = vsel %vm323, %v326, %v328
    %v330 = vsel %vm322, %v309, %v312
    %v331 = vsel %vm325, %v318, 920167782
    %v332 = vsel %vm324, %v315, %v331
    %v333 = vsel %vm323, %v330, %v332
    %v334 = vsel %vm322, %v312, %v315
    %v335 = vsel %vm325, %v321, 1326507024
    %v336 = vsel %vm324, %v318, %v335
    %v337 = vsel %vm323, %v334, %v336
    %v338 = vshll.u32 %v298, 8
    %v339 = vmul.u32.u64.compose %v338, %v337
    %v340 = vextract.low.u32 %v339
    %v341 = vextract.high.u32 %v339
    %v342 = vmul.u32.u64.compose %v338, %v333
    %v343 = vextract.low.u32 %v342
    %v344 = vextract.high.u32 %v342
    %v345 = vmul.u32 %v338, %v329
    %v346 = vadd.s32 %v341, %v343
    %vm347 = vc.u32 %v341, %v343
    %v348 = vadd.s32 %v344, 1
    %v349 = vsel %vm347, %v348, %v344
    %v350 = vadd.s32 %v345, %v349
    %v351 = vadd.s32 %v350, 536870912
    %v352 = vshrl.u32 %v351, 30
    %v353 = vshll.u32 %v352, 30
    %v354 = vsub.s32 %v350, %v353
    %vm355 = vcmp.lt.s32.totalorder %v354, 0
    %v356 = vsub.s32 0, %v354
    %v357 = vsel %vm355, %v356, %v354
    %v358 = vclz %v357
    %v359 = vsub.s32 %v358, 2
    %vm360 = vcmp.gt.s32.totalorder 0, %v359
    %v361 = vsel %vm360, 0, %v359
    %v362 = vsub.s32 32, %v361
    %v363 = vshll.u32 %v354, %v361
    %v364 = vshrl.u32 %v346, %v362
    %v365 = vor.u32 %v363, %v364
    %v366 = vsub.s32 4294967266, %v361
    %v367 = vadd.s32 %v366, 127
    %v368 = vshll.u32 %v367, 23
    %v369 = vor.u32 4788187, %v368
    %v370 = vand.u32 2147483647, %v369
    %v372 = vcvt.s32.f32 %v365
    %v373 = vmul.f32 %v372, %v370
    %v374 = vxor.u32 %v373, 2147483648
    %v375 = vsel %vm292, %v374, %v373
    %v376 = vsub.s32 4, %v352
    %v377 = vsel %vm292, %v376, %v352
    %v378 = vsel %vm291, %v288, %v375
    %v379 = vsel %vm291, 0, %v377
    %v380 = vcosq.f32.pop %v378
    %v381 = vsinq.f32.pop %v378
    %vm382 = vweird.f32 %v288
    %v383 = vadd.s32 %v379, 3
    %v384 = vand.u32 %v383, 3
    %vm385 = vcmp.lt.s32.totalorder %v384, 2
    %vm386 = vcmp.eq.s32.totalorder %v384, 0
    %v387 = vxor.u32 %v381, 2147483648
    %v388 = vsel %vm386, %v380, %v387
    %vm389 = vcmp.eq.s32.totalorder %v384, 2
    %v390 = vxor.u32 %v380, 2147483648
    %v391 = vsel %vm389, %v390, %v381
    %v392 = vsel %vm385, %v388, %v391
    %v393 = vsel %vm382, nan, %v392
    %v394 = vand.u32 2147483647, %v289
    %vm395 = vcmp.le.f32.partialorder %v394, 0.7853982
    %vm396 = vcmp.lt.s32.totalorder %v289, 0
    %v397 = vand.u32 %v289, 2139095040
    %v398 = vshrl.u32 %v397, 23
    %v399 = vsub.s32 %v398, 127
    %v400 = vand.u32 2147483647, %v289
    %v401 = vand.u32 %v400, 8388607
    %v402 = vor.u32 %v401, 8388608
    %v403 = vsub.s32 0, %v402
    %v404 = vadd.s32 %v399, 1
    %vm405 = vcmp.gt.s32.totalorder %v404, 0
    %v406 = vsel %vm405, %v404, 0
    %v407 = vshrl.u32 %v406, 5
    %v408 = vand.u32 %v406, 31
    %v409 = vsub.s32 32, %v408
    %v410 = vshrl.u32 683565275, %v409
    %v411 = vshll.u32 683565275, %v408
    %v412 = vshrl.u32 2475754826, %v409
    %v413 = vor.u32 %v411, %v412
    %v414 = vshll.u32 2475754826, %v408
    %v415 = vshrl.u32 2131351028, %v409
    %v416 = vor.u32 %v414, %v415
    %v417 = vshll.u32 2131351028, %v408
    %v418 = vshrl.u32 2102212464, %v409
    %v419 = vor.u32 %v417, %v418
    %v420 = vshll.u32 2102212464, %v408
    %v421 = vshrl.u32 920167782, %v409
    %v422 = vor.u32 %v420, %v421
    %v423 = vshll.u32 920167782, %v408
    %v424 = vshrl.u32 1326507024, %v409
    %v425 = vor.u32 %v423, %v424
    %vm426 = vcmp.lt.s32.totalorder %v407, 1
    %vm427 = vcmp.lt.s32.totalorder %v407, 2
    %vm428 = vcmp.lt.s32.totalorder %v407, 3
    %vm429 = vcmp.lt.s32.totalorder %v407, 4
    %v430 = vsel %vm426, %v410, %v413
    %v431 = vsel %vm429, %v419, 2102212464
    %v432 = vsel %vm428, %v416, %v431
    %v433 = vsel %vm427, %v430, %v432
    %v434 = vsel %vm426, %v413, %v416
    %v435 = vsel %vm429, %v422, 920167782
    %v436 = vsel %vm428, %v419, %v435
    %v437 = vsel %vm427, %v434, %v436
    %v438 = vsel %vm426, %v416, %v419
    %v439 = vsel %vm429, %v425, 1326507024
    %v440 = vsel %vm428, %v422, %v439
    %v441 = vsel %vm427, %v438, %v440
    %v442 = vshll.u32 %v402, 8
    %v443 = vmul.u32.u64.compose %v442, %v441
    %v444 = vextract.low.u32 %v443
    %v445 = vextract.high.u32 %v443
    %v446 = vmul.u32.u64.compose %v442, %v437
    %v447 = vextract.low.u32 %v446
    %v448 = vextract.high.u32 %v446
    %v449 = vmul.u32 %v442, %v433
    %v450 = vadd.s32 %v445, %v447
    %vm451 = vc.u32 %v445, %v447
    %v452 = vadd.s32 %v448, 1
    %v453 = vsel %vm451, %v452, %v448
    %v454 = vadd.s32 %v449, %v453
    %v455 = vadd.s32 %v454, 536870912
    %v456 = vshrl.u32 %v455, 30
    %v457 = vshll.u32 %v456, 30
    %v458 = vsub.s32 %v454, %v457
    %vm459 = vcmp.lt.s32.totalorder %v458, 0
    %v460 = vsub.s32 0, %v458
    %v461 = vsel %vm459, %v460, %v458
    %v462 = vclz %v461
    %v463 = vsub.s32 %v462, 2
    %vm464 = vcmp.gt.s32.totalorder 0, %v463
    %v465 = vsel %vm464, 0, %v463
    %v466 = vsub.s32 32, %v465
    %v467 = vshll.u32 %v458, %v465
    %v468 = vshrl.u32 %v450, %v466
    %v469 = vor.u32 %v467, %v468
    %v470 = vsub.s32 4294967266, %v465
    %v471 = vadd.s32 %v470, 127
    %v472 = vshll.u32 %v471, 23
    %v473 = vor.u32 4788187, %v472
    %v474 = vand.u32 2147483647, %v473
    %v476 = vcvt.s32.f32 %v469
    %v477 = vmul.f32 %v476, %v474
    %v478 = vxor.u32 %v477, 2147483648
    %v479 = vsel %vm396, %v478, %v477
    %v480 = vsub.s32 4, %v456
    %v481 = vsel %vm396, %v480, %v456
    %v482 = vsel %vm395, %v289, %v479
    %v483 = vsel %vm395, 0, %v481
    %v484 = vcosq.f32.pop %v482
    %v485 = vsinq.f32.pop %v482
    %vm486 = vweird.f32 %v289
    %v487 = vadd.s32 %v483, 3
    %v488 = vand.u32 %v487, 3
    %vm489 = vcmp.lt.s32.totalorder %v488, 2
    %vm490 = vcmp.eq.s32.totalorder %v488, 0
    %v491 = vxor.u32 %v485, 2147483648
    %v492 = vsel %vm490, %v484, %v491
    %vm493 = vcmp.eq.s32.totalorder %v488, 2
    %v494 = vxor.u32 %v484, 2147483648
    %v495 = vsel %vm493, %v494, %v485
    %v496 = vsel %vm489, %v492, %v495
    %v497 = vsel %vm486, nan, %v496
    %v498 = vmul.f32 %v183, %v183
    %v499 = vmul.f32 %v287, %v287
    %v500 = vand.u32 2147483647, %v66
    %vm501 = vcmp.le.f32.partialorder %v500, 0.7853982
    %vm502 = vcmp.lt.s32.totalorder %v66, 0
    %v503 = vand.u32 %v66, 2139095040
    %v504 = vshrl.u32 %v503, 23
    %v505 = vsub.s32 %v504, 127
    %v506 = vand.u32 2147483647, %v66
    %v507 = vand.u32 %v506, 8388607
    %v508 = vor.u32 %v507, 8388608
    %v509 = vsub.s32 0, %v508
    %v510 = vadd.s32 %v505, 1
    %vm511 = vcmp.gt.s32.totalorder %v510, 0
    %v512 = vsel %vm511, %v510, 0
    %v513 = vshrl.u32 %v512, 5
    %v514 = vand.u32 %v512, 31
    %v515 = vsub.s32 32, %v514
    %v516 = vshrl.u32 683565275, %v515
    %v517 = vshll.u32 683565275, %v514
    %v518 = vshrl.u32 2475754826, %v515
    %v519 = vor.u32 %v517, %v518
    %v520 = vshll.u32 2475754826, %v514
    %v521 = vshrl.u32 2131351028, %v515
    %v522 = vor.u32 %v520, %v521
    %v523 = vshll.u32 2131351028, %v514
    %v524 = vshrl.u32 2102212464, %v515
    %v525 = vor.u32 %v523, %v524
    %v526 = vshll.u32 2102212464, %v514
    %v527 = vshrl.u32 920167782, %v515
    %v528 = vor.u32 %v526, %v527
    %v529 = vshll.u32 920167782, %v514
    %v530 = vshrl.u32 1326507024, %v515
    %v531 = vor.u32 %v529, %v530
    %vm532 = vcmp.lt.s32.totalorder %v513, 1
    %vm533 = vcmp.lt.s32.totalorder %v513, 2
    %vm534 = vcmp.lt.s32.totalorder %v513, 3
    %vm535 = vcmp.lt.s32.totalorder %v513, 4
    %v536 = vsel %vm532, %v516, %v519
    %v537 = vsel %vm535, %v525, 2102212464
    %v538 = vsel %vm534, %v522, %v537
    %v539 = vsel %vm533, %v536, %v538
    %v540 = vsel %vm532, %v519, %v522
    %v541 = vsel %vm535, %v528, 920167782
    %v542 = vsel %vm534, %v525, %v541
    %v543 = vsel %vm533, %v540, %v542
    %v544 = vsel %vm532, %v522, %v525
    %v545 = vsel %vm535, %v531, 1326507024
    %v546 = vsel %vm534, %v528, %v545
    %v547 = vsel %vm533, %v544, %v546
    %v548 = vshll.u32 %v508, 8
    %v549 = vmul.u32.u64.compose %v548, %v547
    %v550 = vextract.low.u32 %v549
    %v551 = vextract.high.u32 %v549
    %v552 = vmul.u32.u64.compose %v548, %v543
    %v553 = vextract.low.u32 %v552
    %v554 = vextract.high.u32 %v552
    %v555 = vmul.u32 %v548, %v539
    %v556 = vadd.s32 %v551, %v553
    %vm557 = vc.u32 %v551, %v553
    %v558 = vadd.s32 %v554, 1
    %v559 = vsel %vm557, %v558, %v554
    %v560 = vadd.s32 %v555, %v559
    %v561 = vadd.s32 %v560, 536870912
    %v562 = vshrl.u32 %v561, 30
    %v563 = vshll.u32 %v562, 30
    %v564 = vsub.s32 %v560, %v563
    %vm565 = vcmp.lt.s32.totalorder %v564, 0
    %v566 = vsub.s32 0, %v564
    %v567 = vsel %vm565, %v566, %v564
    %v568 = vclz %v567
    %v569 = vsub.s32 %v568, 2
    %vm570 = vcmp.gt.s32.totalorder 0, %v569
    %v571 = vsel %vm570, 0, %v569
    %v572 = vsub.s32 32, %v571
    %v573 = vshll.u32 %v564, %v571
    %v574 = vshrl.u32 %v556, %v572
    %v575 = vor.u32 %v573, %v574
    %v576 = vsub.s32 4294967266, %v571
    %v577 = vadd.s32 %v576, 127
    %v578 = vshll.u32 %v577, 23
    %v579 = vor.u32 4788187, %v578
    %v580 = vand.u32 2147483647, %v579
    %v582 = vcvt.s32.f32 %v575
    %v583 = vmul.f32 %v582, %v580
    %v584 = vxor.u32 %v583, 2147483648
    %v585 = vsel %vm502, %v584, %v583
    %v586 = vsub.s32 4, %v562
    %v587 = vsel %vm502, %v586, %v562
    %v588 = vsel %vm501, %v66, %v585
    %v589 = vsel %vm501, 0, %v587
    %v590 = vcosq.f32.pop %v588
    %v591 = vsinq.f32.pop %v588
    %vm592 = vweird.f32 %v66
    %v593 = vand.u32 %v589, 3
    %vm594 = vcmp.lt.s32.totalorder %v593, 2
    %vm595 = vcmp.eq.s32.totalorder %v593, 0
    %v596 = vxor.u32 %v591, 2147483648
    %v597 = vsel %vm595, %v590, %v596
    %vm598 = vcmp.eq.s32.totalorder %v593, 2
    %v599 = vxor.u32 %v590, 2147483648
    %v600 = vsel %vm598, %v599, %v591
    %v601 = vsel %vm594, %v597, %v600
    %v602 = vsel %vm592, nan, %v601
    %v603 = vand.u32 2147483647, %v67
    %vm604 = vcmp.le.f32.partialorder %v603, 0.7853982
    %vm605 = vcmp.lt.s32.totalorder %v67, 0
    %v606 = vand.u32 %v67, 2139095040
    %v607 = vshrl.u32 %v606, 23
    %v608 = vsub.s32 %v607, 127
    %v609 = vand.u32 2147483647, %v67
    %v610 = vand.u32 %v609, 8388607
    %v611 = vor.u32 %v610, 8388608
    %v612 = vsub.s32 0, %v611
    %v613 = vadd.s32 %v608, 1
    %vm614 = vcmp.gt.s32.totalorder %v613, 0
    %v615 = vsel %vm614, %v613, 0
    %v616 = vshrl.u32 %v615, 5
    %v617 = vand.u32 %v615, 31
    %v618 = vsub.s32 32, %v617
    %v619 = vshrl.u32 683565275, %v618
    %v620 = vshll.u32 683565275, %v617
    %v621 = vshrl.u32 2475754826, %v618
    %v622 = vor.u32 %v620, %v621
    %v623 = vshll.u32 2475754826, %v617
    %v624 = vshrl.u32 2131351028, %v618
    %v625 = vor.u32 %v623, %v624
    %v626 = vshll.u32 2131351028, %v617
    %v627 = vshrl.u32 2102212464, %v618
    %v628 = vor.u32 %v626, %v627
    %v629 = vshll.u32 2102212464, %v617
    %v630 = vshrl.u32 920167782, %v618
    %v631 = vor.u32 %v629, %v630
    %v632 = vshll.u32 920167782, %v617
    %v633 = vshrl.u32 1326507024, %v618
    %v634 = vor.u32 %v632, %v633
    %vm635 = vcmp.lt.s32.totalorder %v616, 1
    %vm636 = vcmp.lt.s32.totalorder %v616, 2
    %vm637 = vcmp.lt.s32.totalorder %v616, 3
    %vm638 = vcmp.lt.s32.totalorder %v616, 4
    %v639 = vsel %vm635, %v619, %v622
    %v640 = vsel %vm638, %v628, 2102212464
    %v641 = vsel %vm637, %v625, %v640
    %v642 = vsel %vm636, %v639, %v641
    %v643 = vsel %vm635, %v622, %v625
    %v644 = vsel %vm638, %v631, 920167782
    %v645 = vsel %vm637, %v628, %v644
    %v646 = vsel %vm636, %v643, %v645
    %v647 = vsel %vm635, %v625, %v628
    %v648 = vsel %vm638, %v634, 1326507024
    %v649 = vsel %vm637, %v631, %v648
    %v650 = vsel %vm636, %v647, %v649
    %v651 = vshll.u32 %v611, 8
    %v652 = vmul.u32.u64.compose %v651, %v650
    %v653 = vextract.low.u32 %v652
    %v654 = vextract.high.u32 %v652
    %v655 = vmul.u32.u64.compose %v651, %v646
    %v656 = vextract.low.u32 %v655
    %v657 = vextract.high.u32 %v655
    %v658 = vmul.u32 %v651, %v642
    %v659 = vadd.s32 %v654, %v656
    %vm660 = vc.u32 %v654, %v656
    %v661 = vadd.s32 %v657, 1
    %v662 = vsel %vm660, %v661, %v657
    %v663 = vadd.s32 %v658, %v662
    %v664 = vadd.s32 %v663, 536870912
    %v665 = vshrl.u32 %v664, 30
    %v666 = vshll.u32 %v665, 30
    %v667 = vsub.s32 %v663, %v666
    %vm668 = vcmp.lt.s32.totalorder %v667, 0
    %v669 = vsub.s32 0, %v667
    %v670 = vsel %vm668, %v669, %v667
    %v671 = vclz %v670
    %v672 = vsub.s32 %v671, 2
    %vm673 = vcmp.gt.s32.totalorder 0, %v672
    %v674 = vsel %vm673, 0, %v672
    %v675 = vsub.s32 32, %v674
    %v676 = vshll.u32 %v667, %v674
    %v677 = vshrl.u32 %v659, %v675
    %v678 = vor.u32 %v676, %v677
    %v679 = vsub.s32 4294967266, %v674
    %v680 = vadd.s32 %v679, 127
    %v681 = vshll.u32 %v680, 23
    %v682 = vor.u32 4788187, %v681
    %v683 = vand.u32 2147483647, %v682
    %v685 = vcvt.s32.f32 %v678
    %v686 = vmul.f32 %v685, %v683
    %v687 = vxor.u32 %v686, 2147483648
    %v688 = vsel %vm605, %v687, %v686
    %v689 = vsub.s32 4, %v665
    %v690 = vsel %vm605, %v689, %v665
    %v691 = vsel %vm604, %v67, %v688
    %v692 = vsel %vm604, 0, %v690
    %v693 = vcosq.f32.pop %v691
    %v694 = vsinq.f32.pop %v691
    %vm695 = vweird.f32 %v67
    %v696 = vand.u32 %v692, 3
    %vm697 = vcmp.lt.s32.totalorder %v696, 2
    %vm698 = vcmp.eq.s32.totalorder %v696, 0
    %v699 = vxor.u32 %v694, 2147483648
    %v700 = vsel %vm698, %v693, %v699
    %vm701 = vcmp.eq.s32.totalorder %v696, 2
    %v702 = vxor.u32 %v693, 2147483648
    %v703 = vsel %vm701, %v702, %v694
    %v704 = vsel %vm697, %v700, %v703
    %v705 = vsel %vm695, nan, %v704
    %v706 = vand.u32 2147483647, %v68
    %vm707 = vcmp.le.f32.partialorder %v706, 0.7853982
    %vm708 = vcmp.lt.s32.totalorder %v68, 0
    %v709 = vand.u32 %v68, 2139095040
    %v710 = vshrl.u32 %v709, 23
    %v711 = vsub.s32 %v710, 127
    %v712 = vand.u32 2147483647, %v68
    %v713 = vand.u32 %v712, 8388607
    %v714 = vor.u32 %v713, 8388608
    %v715 = vsub.s32 0, %v714
    %v716 = vadd.s32 %v711, 1
    %vm717 = vcmp.gt.s32.totalorder %v716, 0
    %v718 = vsel %vm717, %v716, 0
    %v719 = vshrl.u32 %v718, 5
    %v720 = vand.u32 %v718, 31
    %v721 = vsub.s32 32, %v720
    %v722 = vshrl.u32 683565275, %v721
    %v723 = vshll.u32 683565275, %v720
    %v724 = vshrl.u32 2475754826, %v721
    %v725 = vor.u32 %v723, %v724
    %v726 = vshll.u32 2475754826, %v720
    %v727 = vshrl.u32 2131351028, %v721
    %v728 = vor.u32 %v726, %v727
    %v729 = vshll.u32 2131351028, %v720
    %v730 = vshrl.u32 2102212464, %v721
    %v731 = vor.u32 %v729, %v730
    %v732 = vshll.u32 2102212464, %v720
    %v733 = vshrl.u32 920167782, %v721
    %v734 = vor.u32 %v732, %v733
    %v735 = vshll.u32 920167782, %v720
    %v736 = vshrl.u32 1326507024, %v721
    %v737 = vor.u32 %v735, %v736
    %vm738 = vcmp.lt.s32.totalorder %v719, 1
    %vm739 = vcmp.lt.s32.totalorder %v719, 2
    %vm740 = vcmp.lt.s32.totalorder %v719, 3
    %vm741 = vcmp.lt.s32.totalorder %v719, 4
    %v742 = vsel %vm738, %v722, %v725
    %v743 = vsel %vm741, %v731, 2102212464
    %v744 = vsel %vm740, %v728, %v743
    %v745 = vsel %vm739, %v742, %v744
    %v746 = vsel %vm738, %v725, %v728
    %v747 = vsel %vm741, %v734, 920167782
    %v748 = vsel %vm740, %v731, %v747
    %v749 = vsel %vm739, %v746, %v748
    %v750 = vsel %vm738, %v728, %v731
    %v751 = vsel %vm741, %v737, 1326507024
    %v752 = vsel %vm740, %v734, %v751
    %v753 = vsel %vm739, %v750, %v752
    %v754 = vshll.u32 %v714, 8
    %v755 = vmul.u32.u64.compose %v754, %v753
    %v756 = vextract.low.u32 %v755
    %v757 = vextract.high.u32 %v755
    %v758 = vmul.u32.u64.compose %v754, %v749
    %v759 = vextract.low.u32 %v758
    %v760 = vextract.high.u32 %v758
    %v761 = vmul.u32 %v754, %v745
    %v762 = vadd.s32 %v757, %v759
    %vm763 = vc.u32 %v757, %v759
    %v764 = vadd.s32 %v760, 1
    %v765 = vsel %vm763, %v764, %v760
    %v766 = vadd.s32 %v761, %v765
    %v767 = vadd.s32 %v766, 536870912
    %v768 = vshrl.u32 %v767, 30
    %v769 = vshll.u32 %v768, 30
    %v770 = vsub.s32 %v766, %v769
    %vm771 = vcmp.lt.s32.totalorder %v770, 0
    %v772 = vsub.s32 0, %v770
    %v773 = vsel %vm771, %v772, %v770
    %v774 = vclz %v773
    %v775 = vsub.s32 %v774, 2
    %vm776 = vcmp.gt.s32.totalorder 0, %v775
    %v777 = vsel %vm776, 0, %v775
    %v778 = vsub.s32 32, %v777
    %v779 = vshll.u32 %v770, %v777
    %v780 = vshrl.u32 %v762, %v778
    %v781 = vor.u32 %v779, %v780
    %v782 = vsub.s32 4294967266, %v777
    %v783 = vadd.s32 %v782, 127
    %v784 = vshll.u32 %v783, 23
    %v785 = vor.u32 4788187, %v784
    %v786 = vand.u32 2147483647, %v785
    %v788 = vcvt.s32.f32 %v781
    %v789 = vmul.f32 %v788, %v786
    %v790 = vxor.u32 %v789, 2147483648
    %v791 = vsel %vm708, %v790, %v789
    %v792 = vsub.s32 4, %v768
    %v793 = vsel %vm708, %v792, %v768
    %v794 = vsel %vm707, %v68, %v791
    %v795 = vsel %vm707, 0, %v793
    %v796 = vcosq.f32.pop %v794
    %v797 = vsinq.f32.pop %v794
    %vm798 = vweird.f32 %v68
    %v799 = vand.u32 %v795, 3
    %vm800 = vcmp.lt.s32.totalorder %v799, 2
    %vm801 = vcmp.eq.s32.totalorder %v799, 0
    %v802 = vxor.u32 %v797, 2147483648
    %v803 = vsel %vm801, %v796, %v802
    %vm804 = vcmp.eq.s32.totalorder %v799, 2
    %v805 = vxor.u32 %v796, 2147483648
    %v806 = vsel %vm804, %v805, %v797
    %v807 = vsel %vm800, %v803, %v806
    %v808 = vsel %vm798, nan, %v807
    %v809 = vand.u32 2147483647, %v69
    %vm810 = vcmp.le.f32.partialorder %v809, 0.7853982
    %vm811 = vcmp.lt.s32.totalorder %v69, 0
    %v812 = vand.u32 %v69, 2139095040
    %v813 = vshrl.u32 %v812, 23
    %v814 = vsub.s32 %v813, 127
    %v815 = vand.u32 2147483647, %v69
    %v816 = vand.u32 %v815, 8388607
    %v817 = vor.u32 %v816, 8388608
    %v818 = vsub.s32 0, %v817
    %v819 = vadd.s32 %v814, 1
    %vm820 = vcmp.gt.s32.totalorder %v819, 0
    %v821 = vsel %vm820, %v819, 0
    %v822 = vshrl.u32 %v821, 5
    %v823 = vand.u32 %v821, 31
    %v824 = vsub.s32 32, %v823
    %v825 = vshrl.u32 683565275, %v824
    %v826 = vshll.u32 683565275, %v823
    %v827 = vshrl.u32 2475754826, %v824
    %v828 = vor.u32 %v826, %v827
    %v829 = vshll.u32 2475754826, %v823
    %v830 = vshrl.u32 2131351028, %v824
    %v831 = vor.u32 %v829, %v830
    %v832 = vshll.u32 2131351028, %v823
    %v833 = vshrl.u32 2102212464, %v824
    %v834 = vor.u32 %v832, %v833
    %v835 = vshll.u32 2102212464, %v823
    %v836 = vshrl.u32 920167782, %v824
    %v837 = vor.u32 %v835, %v836
    %v838 = vshll.u32 920167782, %v823
    %v839 = vshrl.u32 1326507024, %v824
    %v840 = vor.u32 %v838, %v839
    %vm841 = vcmp.lt.s32.totalorder %v822, 1
    %vm842 = vcmp.lt.s32.totalorder %v822, 2
    %vm843 = vcmp.lt.s32.totalorder %v822, 3
    %vm844 = vcmp.lt.s32.totalorder %v822, 4
    %v845 = vsel %vm841, %v825, %v828
    %v846 = vsel %vm844, %v834, 2102212464
    %v847 = vsel %vm843, %v831, %v846
    %v848 = vsel %vm842, %v845, %v847
    %v849 = vsel %vm841, %v828, %v831
    %v850 = vsel %vm844, %v837, 920167782
    %v851 = vsel %vm843, %v834, %v850
    %v852 = vsel %vm842, %v849, %v851
    %v853 = vsel %vm841, %v831, %v834
    %v854 = vsel %vm844, %v840, 1326507024
    %v855 = vsel %vm843, %v837, %v854
    %v856 = vsel %vm842, %v853, %v855
    %v857 = vshll.u32 %v817, 8
    %v858 = vmul.u32.u64.compose %v857, %v856
    %v859 = vextract.low.u32 %v858
    %v860 = vextract.high.u32 %v858
    %v861 = vmul.u32.u64.compose %v857, %v852
    %v862 = vextract.low.u32 %v861
    %v863 = vextract.high.u32 %v861
    %v864 = vmul.u32 %v857, %v848
    %v865 = vadd.s32 %v860, %v862
    %vm866 = vc.u32 %v860, %v862
    %v867 = vadd.s32 %v863, 1
    %v868 = vsel %vm866, %v867, %v863
    %v869 = vadd.s32 %v864, %v868
    %v870 = vadd.s32 %v869, 536870912
    %v871 = vshrl.u32 %v870, 30
    %v872 = vshll.u32 %v871, 30
    %v873 = vsub.s32 %v869, %v872
    %vm874 = vcmp.lt.s32.totalorder %v873, 0
    %v875 = vsub.s32 0, %v873
    %v876 = vsel %vm874, %v875, %v873
    %v877 = vclz %v876
    %v878 = vsub.s32 %v877, 2
    %vm879 = vcmp.gt.s32.totalorder 0, %v878
    %v880 = vsel %vm879, 0, %v878
    %v881 = vsub.s32 32, %v880
    %v882 = vshll.u32 %v873, %v880
    %v883 = vshrl.u32 %v865, %v881
    %v884 = vor.u32 %v882, %v883
    %v885 = vsub.s32 4294967266, %v880
    %v886 = vadd.s32 %v885, 127
    %v887 = vshll.u32 %v886, 23
    %v888 = vor.u32 4788187, %v887
    %v889 = vand.u32 2147483647, %v888
    %v891 = vcvt.s32.f32 %v884
    %v892 = vmul.f32 %v891, %v889
    %v893 = vxor.u32 %v892, 2147483648
    %v894 = vsel %vm811, %v893, %v892
    %v895 = vsub.s32 4, %v871
    %v896 = vsel %vm811, %v895, %v871
    %v897 = vsel %vm810, %v69, %v894
    %v898 = vsel %vm810, 0, %v896
    %v899 = vcosq.f32.pop %v897
    %v900 = vsinq.f32.pop %v897
    %vm901 = vweird.f32 %v69
    %v902 = vand.u32 %v898, 3
    %vm903 = vcmp.lt.s32.totalorder %v902, 2
    %vm904 = vcmp.eq.s32.totalorder %v902, 0
    %v905 = vxor.u32 %v900, 2147483648
    %v906 = vsel %vm904, %v899, %v905
    %vm907 = vcmp.eq.s32.totalorder %v902, 2
    %v908 = vxor.u32 %v899, 2147483648
    %v909 = vsel %vm907, %v908, %v900
    %v910 = vsel %vm903, %v906, %v909
    %v911 = vsel %vm901, nan, %v910
    %v912 = vmul.f32 %v602, %v808
    %v913 = vmul.f32 %v705, %v911
    %916 = vrot.lane.b32.xlu0 %v393, 127
    %v917 = vpop.permute.xlu0 %916
    %918 = vrot.lane.b32.xlu0 %v497, 127
    %v919 = vpop.permute.xlu0 %918
    %v922 = vmul.f32 %v912, %v917
    %v923 = vmul.f32 %v913, %v919
    %v924 = vmul.f32 %v922, %v917
    %v925 = vmul.f32 %v923, %v919
    %v926 = vadd.f32 %v498, %v924
    %v927 = vadd.f32 %v499, %v925
    %v928 = vrsqrt.pop %v926
    %v929 = vmul.f32 %v926, %v928
    %vm930 = vcmp.eq.f32.partialorder %v926, inf
    %v931 = vsel %vm930, %v926, %v929
    %vm932 = vcmp.eq.f32.partialorder %v926, 0.0
    %v933 = vand.u32 %v926, 2147483648
    %v934 = vsel %vm932, %v933, %v931
    %v935 = vrsqrt.pop %v927
    %v936 = vmul.f32 %v927, %v935
    %vm937 = vcmp.eq.f32.partialorder %v927, inf
    %v938 = vsel %vm937, %v927, %v936
    %vm939 = vcmp.eq.f32.partialorder %v927, 0.0
    %v940 = vand.u32 %v927, 2147483648
    %v941 = vsel %vm939, %v940, %v938
    %v942 = vsub.f32 1.0, %v926
    %v943 = vsub.f32 1.0, %v927
    %v944 = vadd.f32 %v942, 1e-08
    %v945 = vadd.f32 %v943, 1e-08
    %v946 = vrsqrt.pop %v944
    %v947 = vmul.f32 %v944, %v946
    %vm948 = vcmp.eq.f32.partialorder %v944, inf
    %v949 = vsel %vm948, %v944, %v947
    %vm950 = vcmp.eq.f32.partialorder %v944, 0.0
    %v951 = vand.u32 %v944, 2147483648
    %v952 = vsel %vm950, %v951, %v949
    %v953 = vrsqrt.pop %v945
    %v954 = vmul.f32 %v945, %v953
    %vm955 = vcmp.eq.f32.partialorder %v945, inf
    %v956 = vsel %vm955, %v945, %v954
    %vm957 = vcmp.eq.f32.partialorder %v945, 0.0
    %v958 = vand.u32 %v945, 2147483648
    %v959 = vsel %vm957, %v958, %v956
    %v960 = vadd.f32 %v952, 1.0
    %v961 = vadd.f32 %v959, 1.0
    %v962 = vrcp.pop %v960
    %v963 = vmul.f32 %v934, %v962
    %v964 = vrcp.pop %v961
    %v965 = vmul.f32 %v941, %v964
    %v966 = vmul.f32 %v963, %v963
    %v967 = vmul.f32 %v965, %v965
    %v968 = vadd.f32 %v966, 1.0
    %v969 = vadd.f32 %v967, 1.0
    %v970 = vrsqrt.pop %v968
    %v971 = vmul.f32 %v968, %v970
    %vm972 = vcmp.eq.f32.partialorder %v968, inf
    %v973 = vsel %vm972, %v968, %v971
    %vm974 = vcmp.eq.f32.partialorder %v968, 0.0
    %v975 = vand.u32 %v968, 2147483648
    %v976 = vsel %vm974, %v975, %v973
    %v977 = vrsqrt.pop %v969
    %v978 = vmul.f32 %v969, %v977
    %vm979 = vcmp.eq.f32.partialorder %v969, inf
    %v980 = vsel %vm979, %v969, %v978
    %vm981 = vcmp.eq.f32.partialorder %v969, 0.0
    %v982 = vand.u32 %v969, 2147483648
    %v983 = vsel %vm981, %v982, %v980
    %v984 = vadd.f32 %v976, 1.0
    %v985 = vadd.f32 %v983, 1.0
    %v986 = vrcp.pop %v984
    %v987 = vmul.f32 %v963, %v986
    %v988 = vrcp.pop %v985
    %v989 = vmul.f32 %v965, %v988
    %v990 = vmul.f32 %v987, %v987
    %v991 = vmul.f32 %v989, %v989
    %v992 = vadd.f32 %v990, 1.0
    %v993 = vadd.f32 %v991, 1.0
    %v994 = vrsqrt.pop %v992
    %v995 = vmul.f32 %v992, %v994
    %vm996 = vcmp.eq.f32.partialorder %v992, inf
    %v997 = vsel %vm996, %v992, %v995
    %vm998 = vcmp.eq.f32.partialorder %v992, 0.0
    %v999 = vand.u32 %v992, 2147483648
    %v1000 = vsel %vm998, %v999, %v997
    %v1001 = vrsqrt.pop %v993
    %v1002 = vmul.f32 %v993, %v1001
    %vm1003 = vcmp.eq.f32.partialorder %v993, inf
    %v1004 = vsel %vm1003, %v993, %v1002
    %vm1005 = vcmp.eq.f32.partialorder %v993, 0.0
    %v1006 = vand.u32 %v993, 2147483648
    %v1007 = vsel %vm1005, %v1006, %v1004
    %v1008 = vadd.f32 %v1000, 1.0
    %v1009 = vadd.f32 %v1007, 1.0
    %v1010 = vrcp.pop %v1008
    %v1011 = vmul.f32 %v987, %v1010
    %v1012 = vrcp.pop %v1009
    %v1013 = vmul.f32 %v989, %v1012
    %v1014 = vmul.f32 %v1011, %v1011
    %v1015 = vmul.f32 %v1013, %v1013
    %v1016 = vmul.f32 %v1014, 0.11111111
    %v1017 = vmul.f32 %v1015, 0.11111111
    %v1018 = vadd.f32 %v1016, -0.14285715
    %v1019 = vadd.f32 %v1017, -0.14285715
    %v1020 = vmul.f32 %v1014, %v1018
    %v1021 = vmul.f32 %v1015, %v1019
    %v1022 = vadd.f32 %v1020, 0.2
    %v1023 = vadd.f32 %v1021, 0.2
    %v1024 = vmul.f32 %v1014, %v1022
    %v1025 = vmul.f32 %v1015, %v1023
    %v1026 = vadd.f32 %v1024, -0.33333334
    %v1027 = vadd.f32 %v1025, -0.33333334
    %v1028 = vmul.f32 %v1014, %v1026
    %v1029 = vmul.f32 %v1015, %v1027
    %v1030 = vadd.f32 %v1028, 1.0
    %v1031 = vadd.f32 %v1029, 1.0
    %v1032 = vmul.f32 %v1011, %v1030
    %v1033 = vmul.f32 %v1013, %v1031
    %v1034 = vmul.f32 %v1032, 1.01936e+08
    %v1035 = vmul.f32 %v1033, 1.01936e+08
    %v1036 = vand.u32 2147483647, %v1034
    %v1037 = vand.u32 2147483647, %v1035
    %vm1038 = vcmp.lt.f32.partialorder %v1036, inf
    %vm1039 = vcmp.lt.f32.partialorder %v1037, inf
    %vm1040 = vmxor %vm40, 1
    %vm1041 = vmxor %vm41, 1
    %vm1042 = vmand %vm1038, %vm1040
    %vm1043 = vmand %vm1039, %vm1041
    %v1044 = vsel %vm1042, %v1034, 0.0
    %v1045 = vsel %vm1043, %v1035, 0.0
    %vm1046 = vcmask 7168
    %v1047 = vsel %vm1046, %v1044, 0.0
    %vm1048 = vcmask 1024
    %v1049 = vsel %vm1048, %v1045, 0.0
    %v1050 = vadd.f32 %v1047, %v1049
    %v1051 = vrot.slane %v1050, 4
    %v1052 = vadd.f32 %v1050, %v1051
    %v1053 = vrot.slane %v1052, 2
    %v1054 = vadd.f32 %v1052, %v1053
    %v1055 = vrot.slane %v1054, 1
    %v1056 = vadd.f32 %v1054, %v1055
    %v1057 = vsel %vm1042, 1.0, 0.0
    %v1058 = vsel %vm1043, 1.0, 0.0
    %v1059 = vsel %vm1046, %v1057, 0.0
    %v1060 = vsel %vm1048, %v1058, 0.0
    %v1061 = vadd.f32 %v1059, %v1060
    %v1062 = vrot.slane %v1061, 4
    %v1063 = vadd.f32 %v1061, %v1062
    %v1064 = vrot.slane %v1063, 2
    %v1065 = vadd.f32 %v1063, %v1064
    %v1066 = vrot.slane %v1065, 1
    %v1067 = vadd.f32 %v1065, %v1066
    %v1068 = vrcp.pop %v1067
    %v1069 = vmul.f32 %v1056, %v1068
    %vm1070 = vcmask 0
    %1071 = vst.msk [vmem:[#allocation2] sm:$0x1] %vm1070, %v1069
    // Predicated region
    $region10: #{tpu_custom_call.1} parent=1 // pred_check
      _
    $region11: #{tpu_custom_call.1} parent=1 // pred_check_branch
      %1073 = sbr.rel (0) target = $region13
    $region12: #{tpu_custom_call.1} parent=1 // pred_region
      %s1075 = ssub.s32 16, 16
      %1076 = vsyncadd [#allocation3], %s1075
      %s1078 = sshll.u32 [#allocation2], 4
      %s1079 = int_to_ptr.vmem [resolvable:$true] %s1078
      %1081 = dma.vmem_to_hbm [thread:$0]  %s1079, 16, %s2, [#allocation3]
    $region13: #{tpu_custom_call.1} parent=1 // pred_fallthru
      _
    // Predicated region
    $region14: #{tpu_custom_call.1} parent=1 // pred_check
      _
    $region15: #{tpu_custom_call.1} parent=1 // pred_check_branch
      %1083 = sbr.rel (0) target = $region17
    $region16: #{tpu_custom_call.1} parent=1 // pred_region
      %1084 = dma.done [#allocation3], 16
    $region17: #{tpu_custom_call.1} parent=1 // pred_fallthru
      _
    %1085 = vsyncpa [#allocation3], 1

</llo_original>
